<compile_context>
chip_gen: v5e
topology: v5e:2x2
jax: 0.10.0
libtpu: 0.0.40
codegen_flags: <defaults>
</compile_context>

<pallas_src>
import functools

import jax
import jax.numpy as jnp
from jax import lax
from jax.experimental import pallas as pl
from jax.experimental.pallas import tpu as pltpu

_GROUP = 8  # bags per vreg-tile group (one f32 vreg = 8 sublanes x 128 lanes)


def _round_up(x: int, m: int) -> int:
    return (x + m - 1) // m * m


def _bag_block_kernel(text_ref, off_ref, len_ref, inv_ref,   # scalar prefetch (SMEM)
                      emb_ref, w_ref, b_ref,                 # whole-array VMEM residents
                      out_ref,                               # (TB, Cp) output block
                      acc_ref,                               # (TB, Dp) f32 scratch
                      *, TB: int, Dp: int, text_len: int):
    blk = pl.program_id(0)

    # One-hot sublane columns, hoisted (JAX does not CSE broadcast_in_dim in loops).
    row_sel = [
        (lax.broadcasted_iota(jnp.int32, (_GROUP, 1), 0) == r).astype(jnp.float32)
        for r in range(_GROUP)
    ]

    def group_body(g, carry):
        base = blk * TB + g * _GROUP          # global index of the group's first bag
        starts = [off_ref[base + r] for r in range(_GROUP)]
        counts = [len_ref[base + r] for r in range(_GROUP)]
        invs = [inv_ref[base + r] for r in range(_GROUP)]
        gmax = counts[0]
        for r in range(1, _GROUP):
            gmax = jnp.maximum(gmax, counts[r])

        def tok_body(i, acc):
            # 8 independent row gathers per iteration; each contribution is placed in
            # its bag's sublane via a one-hot column and accumulated full-vreg.
            for r in range(_GROUP):
                idx = jnp.minimum(starts[r] + i, text_len - 1)   # stay in-bounds
                tok = text_ref[idx]
                row = emb_ref[pl.ds(tok, 1), :]                  # (1, Dp) gather
                # Mask (i < len) and mean (1/len) fold into one scalar factor; empty
                # or padded bags get 0 -> zero embedding (torch EmbeddingBag(mean)).
                scale = jnp.where(i < counts[r], invs[r], 0.0)
                acc = acc + (row_sel[r] * scale) * row           # (8, Dp) MAC
            return acc

        acc = lax.fori_loop(0, gmax, tok_body,
                            jnp.zeros((_GROUP, Dp), jnp.float32))
        r0 = pl.multiple_of(g * _GROUP, _GROUP)
        acc_ref[pl.ds(r0, _GROUP), :] = acc                      # one dense store
        return carry

    lax.fori_loop(0, TB // _GROUP, group_body, 0)

    # Single (TB, Dp) @ (Dp, Cp) MXU pass + bias, dense (TB, Cp) output store.
    logits = jnp.dot(acc_ref[...], w_ref[...],
                     preferred_element_type=jnp.float32) + b_ref[...]
    out_ref[...] = logits.astype(out_ref.dtype)


def text_classification_forward(text, offsets, emb, w, bias, *, max_block_bags=128):
    """EmbeddingBag(mode='mean') + Linear forward pass."""
    N = text.shape[0]
    B = offsets.shape[0]
    V, D = emb.shape
    C = w.shape[1]

    # Big enough blocks to amortize the ~0.35us/step pipeline overhead, but for large
    # B keep >= 2 grid steps so v7x megacore has bag-blocks to shard across both TCs.
    TB = min(max_block_bags, max(_GROUP, _round_up(-(-B // 2), _GROUP)))
    B_pad = _round_up(B, TB)
    Vp = _round_up(V, 8)
    Dp = _round_up(D, 128)
    Cp = _round_up(C, 128)

    # Per-bag lengths (torch EmbeddingBag: bag b spans [offsets[b], offsets[b+1]),
    # last bag ends at N). Assumes offsets of length B (not include_last_offset).
    lengths = jnp.concatenate(
        [offsets[1:], jnp.array([N], dtype=offsets.dtype)]) - offsets

    # Pad bag metadata; padded bags are empty (len = 0, inv = 0 -> zero embedding).
    off_p = jnp.concatenate(
        [offsets.astype(jnp.int32), jnp.zeros((B_pad - B,), jnp.int32)])
    len_p = jnp.concatenate(
        [lengths.astype(jnp.int32), jnp.zeros((B_pad - B,), jnp.int32)])
    inv_p = jnp.where(len_p > 0,
                      1.0 / jnp.maximum(len_p, 1).astype(jnp.float32),
                      0.0)

    # Clip token ids defensively (VMEM reads have no runtime bounds check).
    text_i = jnp.clip(text.astype(jnp.int32), 0, V - 1)

    # Lane-align everything; zero padding is exact (padded emb cols contribute 0,
    # padded w rows/cols and bias cols are 0, padded output cols are sliced off).
    emb_p = jnp.zeros((Vp, Dp), jnp.float32).at[:V, :D].set(emb.astype(jnp.float32))
    w_p = jnp.zeros((Dp, Cp), jnp.float32).at[:D, :C].set(w.astype(jnp.float32))
    b_p = jnp.zeros((1, Cp), jnp.float32).at[:, :C].set(
        bias.reshape(1, C).astype(jnp.float32))

    grid = (B_pad // TB,)
    kernel = functools.partial(_bag_block_kernel, TB=TB, Dp=Dp, text_len=N)

    cost = pl.CostEstimate(
        flops=int(2 * N * Dp + 2 * B_pad * Dp * Cp),
        transcendentals=0,
        bytes_accessed=int(4 * (N + Vp * Dp + Dp * Cp + Cp + B_pad * Cp)),
    )

    # Raise the scoped VMEM limit above the default (16 MiB v5e / 32 MiB v6e,v7x) so
    # larger tables still place; sized from the actual footprint with headroom.
    resident_bytes = 4 * (Vp * Dp + Dp * Cp + Cp)       # single-buffered residents
    pipeline_bytes = 4 * (2 * TB * Cp + TB * Dp)        # out double-buffer + scratch
    vmem_limit = int(min(100 * 2**20,
                         max(32 * 2**20, (resident_bytes + pipeline_bytes) * 3 // 2)))

    out_p = pl.pallas_call(
        kernel,
        out_shape=jax.ShapeDtypeStruct((B_pad, Cp), jnp.float32),
        grid_spec=pltpu.PrefetchScalarGridSpec(
            num_scalar_prefetch=4,            # text, offsets, lengths, 1/len -> SMEM
            grid=grid,
            in_specs=[
                # Grid-invariant operands: whole-array VMEM residents (single-buffered,
                # no 2x VMEM for blocks whose index_map never changes).
                pl.BlockSpec(memory_space=pltpu.MemorySpace.VMEM),   # embedding table
                pl.BlockSpec(memory_space=pltpu.MemorySpace.VMEM),   # fc weight
                pl.BlockSpec(memory_space=pltpu.MemorySpace.VMEM),   # fc bias
            ],
            out_specs=pl.BlockSpec((TB, Cp), lambda b, *_: (b, 0)),
            scratch_shapes=[pltpu.VMEM((TB, Dp), jnp.float32)],
        ),
        compiler_params=pltpu.CompilerParams(
            dimension_semantics=("parallel",),
            vmem_limit_bytes=vmem_limit),
        cost_estimate=cost,
    )(text_i, off_p, len_p, inv_p, emb_p, w_p, b_p)

    return out_p[:B, :C]


def _reference(text, offsets, emb, w, bias):
    """Pure-JAX reference matching torch EmbeddingBag(mean) + Linear."""
    N = text.shape[0]
    B = offsets.shape[0]
    lengths = jnp.concatenate(
        [offsets[1:], jnp.array([N], dtype=offsets.dtype)]) - offsets
    gathered = emb[text]                                     # (N, D)
    seg_ids = jnp.repeat(jnp.arange(B), lengths, total_repeat_length=N)
    sums = jax.ops.segment_sum(gathered, seg_ids, num_segments=B)
    means = sums / jnp.maximum(lengths, 1)[:, None].astype(jnp.float32)
    return means @ w + bias


if __name__ == "__main__":
    # Small, deterministic problem sizes.
    V, D, C = 50, 32, 4          # vocab_size, embed_dim, num_class
    N, B = 8, 2                  # total tokens, number of bags

    key = jax.random.PRNGKey(0)
    k_emb, k_w, k_txt = jax.random.split(key, 3)

    # nn.init.uniform_(embedding.weight, -0.5, 0.5)
    emb = jax.random.uniform(k_emb, (V, D), jnp.float32, -0.5, 0.5)
    # nn.init.xavier_uniform_(fc.weight): bound = sqrt(6 / (fan_in + fan_out))
    bound = (6.0 / (D + C)) ** 0.5
    w = jax.random.uniform(k_w, (D, C), jnp.float32, -bound, bound)
    bias = jnp.zeros((1, C), jnp.float32)   # nn.init.zeros_(fc.bias)

    text = jax.random.randint(k_txt, (N,), 0, V).astype(jnp.int32)
    offsets = jnp.array([0, 5], dtype=jnp.int32)

    out = text_classification_forward(text, offsets, emb, w, bias)
    out = jax.block_until_ready(out)

    ref = _reference(text, offsets, emb, w, bias)
    assert out.shape == (B, C)
    assert jnp.allclose(out, ref, atol=1e-4, rtol=1e-4), (out, ref)

    print("KERNEL_OK")
</pallas_src>

<mosaic_0001>
module attributes {stable_mosaic.version = 11 : i64} {
  func.func @_bag_block_kernel(%arg0: i32, %arg1: memref<8xi32, #tpu.memory_space<smem>>, %arg2: memref<8xi32, #tpu.memory_space<smem>>, %arg3: memref<8xi32, #tpu.memory_space<smem>>, %arg4: memref<8xf32, #tpu.memory_space<smem>>, %arg5: memref<56x128xf32, #tpu.memory_space<vmem>>, %arg6: memref<128x128xf32, #tpu.memory_space<vmem>>, %arg7: memref<1x128xf32, #tpu.memory_space<vmem>>, %arg8: memref<8x128xf32, #tpu.memory_space<vmem>>, %arg9: memref<8x128xf32, #tpu.memory_space<vmem>>) attributes {dimension_semantics = [#tpu.dimension_semantics<parallel>], iteration_bounds = array<i64: 1>, scalar_prefetch = 4 : i64, scratch_operands = 1 : i64, tpu.core_type = #tpu.core_type<tc>, window_params = [{pipeline_mode = #tpu.pipeline_mode<synchronous>, transform_indices = @transform_0, window_bounds = array<i64: 56, 128>}, {pipeline_mode = #tpu.pipeline_mode<synchronous>, transform_indices = @transform_1, window_bounds = array<i64: 128, 128>}, {pipeline_mode = #tpu.pipeline_mode<synchronous>, transform_indices = @transform_2, window_bounds = array<i64: 1, 128>}, {transform_indices = @transform_3, window_bounds = array<i64: 8, 128>}]} {
    %0 = tpu.iota {dimensions = array<i32: 0>} : vector<8x1xi32>
    %c0_i32 = arith.constant 0 : i32
    %1 = vector.broadcast %c0_i32 : i32 to vector<8x1xi32>
    %2 = arith.cmpi eq, %0, %1 : vector<8x1xi32>
    %3 = arith.extui %2 : vector<8x1xi1> to vector<8x1xi32>
    %4 = arith.sitofp %3 : vector<8x1xi32> to vector<8x1xf32>
    %5 = tpu.iota {dimensions = array<i32: 0>} : vector<8x1xi32>
    %c1_i32 = arith.constant 1 : i32
    %6 = vector.broadcast %c1_i32 : i32 to vector<8x1xi32>
    %7 = arith.cmpi eq, %5, %6 : vector<8x1xi32>
    %8 = arith.extui %7 : vector<8x1xi1> to vector<8x1xi32>
    %9 = arith.sitofp %8 : vector<8x1xi32> to vector<8x1xf32>
    %10 = tpu.iota {dimensions = array<i32: 0>} : vector<8x1xi32>
    %c2_i32 = arith.constant 2 : i32
    %11 = vector.broadcast %c2_i32 : i32 to vector<8x1xi32>
    %12 = arith.cmpi eq, %10, %11 : vector<8x1xi32>
    %13 = arith.extui %12 : vector<8x1xi1> to vector<8x1xi32>
    %14 = arith.sitofp %13 : vector<8x1xi32> to vector<8x1xf32>
    %15 = tpu.iota {dimensions = array<i32: 0>} : vector<8x1xi32>
    %c3_i32 = arith.constant 3 : i32
    %16 = vector.broadcast %c3_i32 : i32 to vector<8x1xi32>
    %17 = arith.cmpi eq, %15, %16 : vector<8x1xi32>
    %18 = arith.extui %17 : vector<8x1xi1> to vector<8x1xi32>
    %19 = arith.sitofp %18 : vector<8x1xi32> to vector<8x1xf32>
    %20 = tpu.iota {dimensions = array<i32: 0>} : vector<8x1xi32>
    %c4_i32 = arith.constant 4 : i32
    %21 = vector.broadcast %c4_i32 : i32 to vector<8x1xi32>
    %22 = arith.cmpi eq, %20, %21 : vector<8x1xi32>
    %23 = arith.extui %22 : vector<8x1xi1> to vector<8x1xi32>
    %24 = arith.sitofp %23 : vector<8x1xi32> to vector<8x1xf32>
    %25 = tpu.iota {dimensions = array<i32: 0>} : vector<8x1xi32>
    %c5_i32 = arith.constant 5 : i32
    %26 = vector.broadcast %c5_i32 : i32 to vector<8x1xi32>
    %27 = arith.cmpi eq, %25, %26 : vector<8x1xi32>
    %28 = arith.extui %27 : vector<8x1xi1> to vector<8x1xi32>
    %29 = arith.sitofp %28 : vector<8x1xi32> to vector<8x1xf32>
    %30 = tpu.iota {dimensions = array<i32: 0>} : vector<8x1xi32>
    %c6_i32 = arith.constant 6 : i32
    %31 = vector.broadcast %c6_i32 : i32 to vector<8x1xi32>
    %32 = arith.cmpi eq, %30, %31 : vector<8x1xi32>
    %33 = arith.extui %32 : vector<8x1xi1> to vector<8x1xi32>
    %34 = arith.sitofp %33 : vector<8x1xi32> to vector<8x1xf32>
    %35 = tpu.iota {dimensions = array<i32: 0>} : vector<8x1xi32>
    %c7_i32 = arith.constant 7 : i32
    %36 = vector.broadcast %c7_i32 : i32 to vector<8x1xi32>
    %37 = arith.cmpi eq, %35, %36 : vector<8x1xi32>
    %38 = arith.extui %37 : vector<8x1xi1> to vector<8x1xi32>
    %39 = arith.sitofp %38 : vector<8x1xi32> to vector<8x1xf32>
    %c0_i32_0 = arith.constant 0 : i32
    %c8_i32 = arith.constant 8 : i32
    %40 = arith.muli %arg0, %c8_i32 : i32
    %c8_i32_1 = arith.constant 8 : i32
    %41 = arith.muli %c0_i32_0, %c8_i32_1 : i32
    %42 = arith.addi %40, %41 : i32
    %c0_i32_2 = arith.constant 0 : i32
    %43 = arith.addi %42, %c0_i32_2 : i32
    %44 = arith.index_cast %43 : i32 to index
    %45 = memref.load %arg2[%44] : memref<8xi32, #tpu.memory_space<smem>>
    %c1_i32_3 = arith.constant 1 : i32
    %46 = arith.addi %42, %c1_i32_3 : i32
    %47 = arith.index_cast %46 : i32 to index
    %48 = memref.load %arg2[%47] : memref<8xi32, #tpu.memory_space<smem>>
    %c2_i32_4 = arith.constant 2 : i32
    %49 = arith.addi %42, %c2_i32_4 : i32
    %50 = arith.index_cast %49 : i32 to index
    %51 = memref.load %arg2[%50] : memref<8xi32, #tpu.memory_space<smem>>
    %c3_i32_5 = arith.constant 3 : i32
    %52 = arith.addi %42, %c3_i32_5 : i32
    %53 = arith.index_cast %52 : i32 to index
    %54 = memref.load %arg2[%53] : memref<8xi32, #tpu.memory_space<smem>>
    %c4_i32_6 = arith.constant 4 : i32
    %55 = arith.addi %42, %c4_i32_6 : i32
    %56 = arith.index_cast %55 : i32 to index
    %57 = memref.load %arg2[%56] : memref<8xi32, #tpu.memory_space<smem>>
    %c5_i32_7 = arith.constant 5 : i32
    %58 = arith.addi %42, %c5_i32_7 : i32
    %59 = arith.index_cast %58 : i32 to index
    %60 = memref.load %arg2[%59] : memref<8xi32, #tpu.memory_space<smem>>
    %c6_i32_8 = arith.constant 6 : i32
    %61 = arith.addi %42, %c6_i32_8 : i32
    %62 = arith.index_cast %61 : i32 to index
    %63 = memref.load %arg2[%62] : memref<8xi32, #tpu.memory_space<smem>>
    %c7_i32_9 = arith.constant 7 : i32
    %64 = arith.addi %42, %c7_i32_9 : i32
    %65 = arith.index_cast %64 : i32 to index
    %66 = memref.load %arg2[%65] : memref<8xi32, #tpu.memory_space<smem>>
    %c0_i32_10 = arith.constant 0 : i32
    %67 = arith.addi %42, %c0_i32_10 : i32
    %68 = arith.index_cast %67 : i32 to index
    %69 = memref.load %arg3[%68] : memref<8xi32, #tpu.memory_space<smem>>
    %c1_i32_11 = arith.constant 1 : i32
    %70 = arith.addi %42, %c1_i32_11 : i32
    %71 = arith.index_cast %70 : i32 to index
    %72 = memref.load %arg3[%71] : memref<8xi32, #tpu.memory_space<smem>>
    %c2_i32_12 = arith.constant 2 : i32
    %73 = arith.addi %42, %c2_i32_12 : i32
    %74 = arith.index_cast %73 : i32 to index
    %75 = memref.load %arg3[%74] : memref<8xi32, #tpu.memory_space<smem>>
    %c3_i32_13 = arith.constant 3 : i32
    %76 = arith.addi %42, %c3_i32_13 : i32
    %77 = arith.index_cast %76 : i32 to index
    %78 = memref.load %arg3[%77] : memref<8xi32, #tpu.memory_space<smem>>
    %c4_i32_14 = arith.constant 4 : i32
    %79 = arith.addi %42, %c4_i32_14 : i32
    %80 = arith.index_cast %79 : i32 to index
    %81 = memref.load %arg3[%80] : memref<8xi32, #tpu.memory_space<smem>>
    %c5_i32_15 = arith.constant 5 : i32
    %82 = arith.addi %42, %c5_i32_15 : i32
    %83 = arith.index_cast %82 : i32 to index
    %84 = memref.load %arg3[%83] : memref<8xi32, #tpu.memory_space<smem>>
    %c6_i32_16 = arith.constant 6 : i32
    %85 = arith.addi %42, %c6_i32_16 : i32
    %86 = arith.index_cast %85 : i32 to index
    %87 = memref.load %arg3[%86] : memref<8xi32, #tpu.memory_space<smem>>
    %c7_i32_17 = arith.constant 7 : i32
    %88 = arith.addi %42, %c7_i32_17 : i32
    %89 = arith.index_cast %88 : i32 to index
    %90 = memref.load %arg3[%89] : memref<8xi32, #tpu.memory_space<smem>>
    %c0_i32_18 = arith.constant 0 : i32
    %91 = arith.addi %42, %c0_i32_18 : i32
    %92 = arith.index_cast %91 : i32 to index
    %93 = memref.load %arg4[%92] : memref<8xf32, #tpu.memory_space<smem>>
    %c1_i32_19 = arith.constant 1 : i32
    %94 = arith.addi %42, %c1_i32_19 : i32
    %95 = arith.index_cast %94 : i32 to index
    %96 = memref.load %arg4[%95] : memref<8xf32, #tpu.memory_space<smem>>
    %c2_i32_20 = arith.constant 2 : i32
    %97 = arith.addi %42, %c2_i32_20 : i32
    %98 = arith.index_cast %97 : i32 to index
    %99 = memref.load %arg4[%98] : memref<8xf32, #tpu.memory_space<smem>>
    %c3_i32_21 = arith.constant 3 : i32
    %100 = arith.addi %42, %c3_i32_21 : i32
    %101 = arith.index_cast %100 : i32 to index
    %102 = memref.load %arg4[%101] : memref<8xf32, #tpu.memory_space<smem>>
    %c4_i32_22 = arith.constant 4 : i32
    %103 = arith.addi %42, %c4_i32_22 : i32
    %104 = arith.index_cast %103 : i32 to index
    %105 = memref.load %arg4[%104] : memref<8xf32, #tpu.memory_space<smem>>
    %c5_i32_23 = arith.constant 5 : i32
    %106 = arith.addi %42, %c5_i32_23 : i32
    %107 = arith.index_cast %106 : i32 to index
    %108 = memref.load %arg4[%107] : memref<8xf32, #tpu.memory_space<smem>>
    %c6_i32_24 = arith.constant 6 : i32
    %109 = arith.addi %42, %c6_i32_24 : i32
    %110 = arith.index_cast %109 : i32 to index
    %111 = memref.load %arg4[%110] : memref<8xf32, #tpu.memory_space<smem>>
    %c7_i32_25 = arith.constant 7 : i32
    %112 = arith.addi %42, %c7_i32_25 : i32
    %113 = arith.index_cast %112 : i32 to index
    %114 = memref.load %arg4[%113] : memref<8xf32, #tpu.memory_space<smem>>
    %115 = arith.maxsi %69, %72 : i32
    %116 = arith.maxsi %115, %75 : i32
    %117 = arith.maxsi %116, %78 : i32
    %118 = arith.maxsi %117, %81 : i32
    %119 = arith.maxsi %118, %84 : i32
    %120 = arith.maxsi %119, %87 : i32
    %121 = arith.maxsi %120, %90 : i32
    %cst = arith.constant 0.000000e+00 : f32
    %122 = vector.broadcast %cst : f32 to vector<8x128xf32>
    %c0_i32_26 = arith.constant 0 : i32
    %123 = arith.subi %121, %c0_i32_26 : i32
    %124 = arith.addi %c0_i32_26, %123 : i32
    %c1_i32_27 = arith.constant 1 : i32
    %125 = scf.for %arg10 = %c0_i32_26 to %124 step %c1_i32_27 iter_args(%arg11 = %122) -> (vector<8x128xf32>)  : i32 {
      %137 = arith.addi %45, %arg10 : i32
      %c7_i32_39 = arith.constant 7 : i32
      %138 = arith.minsi %137, %c7_i32_39 : i32
      %139 = arith.index_cast %138 : i32 to index
      %140 = memref.load %arg1[%139] : memref<8xi32, #tpu.memory_space<smem>>
      %141 = arith.index_cast %140 : i32 to index
      %c0_40 = arith.constant 0 : index
      %142 = vector.load %arg5[%141, %c0_40] : memref<56x128xf32, #tpu.memory_space<vmem>>, vector<1x128xf32>
      %143 = arith.cmpi slt, %arg10, %69 : i32
      %cst_41 = arith.constant 0.000000e+00 : f32
      %144 = arith.select %143, %93, %cst_41 : f32
      %145 = vector.broadcast %144 : f32 to vector<8x1xf32>
      %146 = arith.mulf %4, %145 : vector<8x1xf32>
      %147 = vector.broadcast %146 : vector<8x1xf32> to vector<8x128xf32>
      %148 = vector.broadcast %142 : vector<1x128xf32> to vector<8x128xf32>
      %149 = arith.mulf %147, %148 : vector<8x128xf32>
      %150 = arith.addf %arg11, %149 : vector<8x128xf32>
      %151 = arith.addi %48, %arg10 : i32
      %c7_i32_42 = arith.constant 7 : i32
      %152 = arith.minsi %151, %c7_i32_42 : i32
      %153 = arith.index_cast %152 : i32 to index
      %154 = memref.load %arg1[%153] : memref<8xi32, #tpu.memory_space<smem>>
      %155 = arith.index_cast %154 : i32 to index
      %c0_43 = arith.constant 0 : index
      %156 = vector.load %arg5[%155, %c0_43] : memref<56x128xf32, #tpu.memory_space<vmem>>, vector<1x128xf32>
      %157 = arith.cmpi slt, %arg10, %72 : i32
      %cst_44 = arith.constant 0.000000e+00 : f32
      %158 = arith.select %157, %96, %cst_44 : f32
      %159 = vector.broadcast %158 : f32 to vector<8x1xf32>
      %160 = arith.mulf %9, %159 : vector<8x1xf32>
      %161 = vector.broadcast %160 : vector<8x1xf32> to vector<8x128xf32>
      %162 = vector.broadcast %156 : vector<1x128xf32> to vector<8x128xf32>
      %163 = arith.mulf %161, %162 : vector<8x128xf32>
      %164 = arith.addf %150, %163 : vector<8x128xf32>
      %165 = arith.addi %51, %arg10 : i32
      %c7_i32_45 = arith.constant 7 : i32
      %166 = arith.minsi %165, %c7_i32_45 : i32
      %167 = arith.index_cast %166 : i32 to index
      %168 = memref.load %arg1[%167] : memref<8xi32, #tpu.memory_space<smem>>
      %169 = arith.index_cast %168 : i32 to index
      %c0_46 = arith.constant 0 : index
      %170 = vector.load %arg5[%169, %c0_46] : memref<56x128xf32, #tpu.memory_space<vmem>>, vector<1x128xf32>
      %171 = arith.cmpi slt, %arg10, %75 : i32
      %cst_47 = arith.constant 0.000000e+00 : f32
      %172 = arith.select %171, %99, %cst_47 : f32
      %173 = vector.broadcast %172 : f32 to vector<8x1xf32>
      %174 = arith.mulf %14, %173 : vector<8x1xf32>
      %175 = vector.broadcast %174 : vector<8x1xf32> to vector<8x128xf32>
      %176 = vector.broadcast %170 : vector<1x128xf32> to vector<8x128xf32>
      %177 = arith.mulf %175, %176 : vector<8x128xf32>
      %178 = arith.addf %164, %177 : vector<8x128xf32>
      %179 = arith.addi %54, %arg10 : i32
      %c7_i32_48 = arith.constant 7 : i32
      %180 = arith.minsi %179, %c7_i32_48 : i32
      %181 = arith.index_cast %180 : i32 to index
      %182 = memref.load %arg1[%181] : memref<8xi32, #tpu.memory_space<smem>>
      %183 = arith.index_cast %182 : i32 to index
      %c0_49 = arith.constant 0 : index
      %184 = vector.load %arg5[%183, %c0_49] : memref<56x128xf32, #tpu.memory_space<vmem>>, vector<1x128xf32>
      %185 = arith.cmpi slt, %arg10, %78 : i32
      %cst_50 = arith.constant 0.000000e+00 : f32
      %186 = arith.select %185, %102, %cst_50 : f32
      %187 = vector.broadcast %186 : f32 to vector<8x1xf32>
      %188 = arith.mulf %19, %187 : vector<8x1xf32>
      %189 = vector.broadcast %188 : vector<8x1xf32> to vector<8x128xf32>
      %190 = vector.broadcast %184 : vector<1x128xf32> to vector<8x128xf32>
      %191 = arith.mulf %189, %190 : vector<8x128xf32>
      %192 = arith.addf %178, %191 : vector<8x128xf32>
      %193 = arith.addi %57, %arg10 : i32
      %c7_i32_51 = arith.constant 7 : i32
      %194 = arith.minsi %193, %c7_i32_51 : i32
      %195 = arith.index_cast %194 : i32 to index
      %196 = memref.load %arg1[%195] : memref<8xi32, #tpu.memory_space<smem>>
      %197 = arith.index_cast %196 : i32 to index
      %c0_52 = arith.constant 0 : index
      %198 = vector.load %arg5[%197, %c0_52] : memref<56x128xf32, #tpu.memory_space<vmem>>, vector<1x128xf32>
      %199 = arith.cmpi slt, %arg10, %81 : i32
      %cst_53 = arith.constant 0.000000e+00 : f32
      %200 = arith.select %199, %105, %cst_53 : f32
      %201 = vector.broadcast %200 : f32 to vector<8x1xf32>
      %202 = arith.mulf %24, %201 : vector<8x1xf32>
      %203 = vector.broadcast %202 : vector<8x1xf32> to vector<8x128xf32>
      %204 = vector.broadcast %198 : vector<1x128xf32> to vector<8x128xf32>
      %205 = arith.mulf %203, %204 : vector<8x128xf32>
      %206 = arith.addf %192, %205 : vector<8x128xf32>
      %207 = arith.addi %60, %arg10 : i32
      %c7_i32_54 = arith.constant 7 : i32
      %208 = arith.minsi %207, %c7_i32_54 : i32
      %209 = arith.index_cast %208 : i32 to index
      %210 = memref.load %arg1[%209] : memref<8xi32, #tpu.memory_space<smem>>
      %211 = arith.index_cast %210 : i32 to index
      %c0_55 = arith.constant 0 : index
      %212 = vector.load %arg5[%211, %c0_55] : memref<56x128xf32, #tpu.memory_space<vmem>>, vector<1x128xf32>
      %213 = arith.cmpi slt, %arg10, %84 : i32
      %cst_56 = arith.constant 0.000000e+00 : f32
      %214 = arith.select %213, %108, %cst_56 : f32
      %215 = vector.broadcast %214 : f32 to vector<8x1xf32>
      %216 = arith.mulf %29, %215 : vector<8x1xf32>
      %217 = vector.broadcast %216 : vector<8x1xf32> to vector<8x128xf32>
      %218 = vector.broadcast %212 : vector<1x128xf32> to vector<8x128xf32>
      %219 = arith.mulf %217, %218 : vector<8x128xf32>
      %220 = arith.addf %206, %219 : vector<8x128xf32>
      %221 = arith.addi %63, %arg10 : i32
      %c7_i32_57 = arith.constant 7 : i32
      %222 = arith.minsi %221, %c7_i32_57 : i32
      %223 = arith.index_cast %222 : i32 to index
      %224 = memref.load %arg1[%223] : memref<8xi32, #tpu.memory_space<smem>>
      %225 = arith.index_cast %224 : i32 to index
      %c0_58 = arith.constant 0 : index
      %226 = vector.load %arg5[%225, %c0_58] : memref<56x128xf32, #tpu.memory_space<vmem>>, vector<1x128xf32>
      %227 = arith.cmpi slt, %arg10, %87 : i32
      %cst_59 = arith.constant 0.000000e+00 : f32
      %228 = arith.select %227, %111, %cst_59 : f32
      %229 = vector.broadcast %228 : f32 to vector<8x1xf32>
      %230 = arith.mulf %34, %229 : vector<8x1xf32>
      %231 = vector.broadcast %230 : vector<8x1xf32> to vector<8x128xf32>
      %232 = vector.broadcast %226 : vector<1x128xf32> to vector<8x128xf32>
      %233 = arith.mulf %231, %232 : vector<8x128xf32>
      %234 = arith.addf %220, %233 : vector<8x128xf32>
      %235 = arith.addi %66, %arg10 : i32
      %c7_i32_60 = arith.constant 7 : i32
      %236 = arith.minsi %235, %c7_i32_60 : i32
      %237 = arith.index_cast %236 : i32 to index
      %238 = memref.load %arg1[%237] : memref<8xi32, #tpu.memory_space<smem>>
      %239 = arith.index_cast %238 : i32 to index
      %c0_61 = arith.constant 0 : index
      %240 = vector.load %arg5[%239, %c0_61] : memref<56x128xf32, #tpu.memory_space<vmem>>, vector<1x128xf32>
      %241 = arith.cmpi slt, %arg10, %90 : i32
      %cst_62 = arith.constant 0.000000e+00 : f32
      %242 = arith.select %241, %114, %cst_62 : f32
      %243 = vector.broadcast %242 : f32 to vector<8x1xf32>
      %244 = arith.mulf %39, %243 : vector<8x1xf32>
      %245 = vector.broadcast %244 : vector<8x1xf32> to vector<8x128xf32>
      %246 = vector.broadcast %240 : vector<1x128xf32> to vector<8x128xf32>
      %247 = arith.mulf %245, %246 : vector<8x128xf32>
      %248 = arith.addf %234, %247 : vector<8x128xf32>
      scf.yield %248 : vector<8x128xf32>
    }
    %c8_i32_28 = arith.constant 8 : i32
    %126 = arith.muli %c0_i32_0, %c8_i32_28 : i32
    %127 = tpu.assume_multiple %126, 8 : i32
    %128 = arith.index_cast %127 : i32 to index
    %c0 = arith.constant 0 : index
    %129 = vector.load %arg9[%128, %c0] : memref<8x128xf32, #tpu.memory_space<vmem>>, vector<8x128xf32>
    tpu.vector_store %arg9[%128, %c0], %125 {strides = array<i32>} : memref<8x128xf32, #tpu.memory_space<vmem>>, vector<8x128xf32>,
    %c1_i32_29 = arith.constant 1 : i32
    %c0_30 = arith.constant 0 : index
    %c0_31 = arith.constant 0 : index
    %130 = vector.load %arg9[%c0_30, %c0_31] : memref<8x128xf32, #tpu.memory_space<vmem>>, vector<8x128xf32>
    %c0_32 = arith.constant 0 : index
    %c0_33 = arith.constant 0 : index
    %131 = vector.load %arg6[%c0_32, %c0_33] : memref<128x128xf32, #tpu.memory_space<vmem>>, vector<128x128xf32>
    %cst_34 = arith.constant dense<0.000000e+00> : vector<8x128xf32>
    %132 = tpu.matmul %130, %131, %cst_34 {dimension_numbers = #tpu.dot_dimension_numbers<[1], [0], [0], [1], [0, 0, 1, 1], [], []>} : vector<8x128xf32>, vector<128x128xf32>, vector<8x128xf32> -> vector<8x128xf32>
    %c0_35 = arith.constant 0 : index
    %c0_36 = arith.constant 0 : index
    %133 = vector.load %arg7[%c0_35, %c0_36] : memref<1x128xf32, #tpu.memory_space<vmem>>, vector<1x128xf32>
    %134 = vector.broadcast %133 : vector<1x128xf32> to vector<8x128xf32>
    %135 = arith.addf %132, %134 : vector<8x128xf32>
    %c0_37 = arith.constant 0 : index
    %c0_38 = arith.constant 0 : index
    %136 = vector.load %arg8[%c0_37, %c0_38] : memref<8x128xf32, #tpu.memory_space<vmem>>, vector<8x128xf32>
    tpu.vector_store %arg8[%c0_37, %c0_38], %135 {strides = array<i32>} : memref<8x128xf32, #tpu.memory_space<vmem>>, vector<8x128xf32>,
    return
  }
  func.func @transform_0(%arg0: i32, %arg1: memref<8xi32, #tpu.memory_space<smem>>, %arg2: memref<8xi32, #tpu.memory_space<smem>>, %arg3: memref<8xi32, #tpu.memory_space<smem>>, %arg4: memref<8xf32, #tpu.memory_space<smem>>) -> (i32, i32) {
    %c0_i32 = arith.constant 0 : i32
    %c0_i32_0 = arith.constant 0 : i32
    %c0_i32_1 = arith.constant 0 : i32
    return %c0_i32, %c0_i32_0 : i32, i32
  }
  func.func @transform_1(%arg0: i32, %arg1: memref<8xi32, #tpu.memory_space<smem>>, %arg2: memref<8xi32, #tpu.memory_space<smem>>, %arg3: memref<8xi32, #tpu.memory_space<smem>>, %arg4: memref<8xf32, #tpu.memory_space<smem>>) -> (i32, i32) {
    %c0_i32 = arith.constant 0 : i32
    %c0_i32_0 = arith.constant 0 : i32
    %c0_i32_1 = arith.constant 0 : i32
    return %c0_i32, %c0_i32_0 : i32, i32
  }
  func.func @transform_2(%arg0: i32, %arg1: memref<8xi32, #tpu.memory_space<smem>>, %arg2: memref<8xi32, #tpu.memory_space<smem>>, %arg3: memref<8xi32, #tpu.memory_space<smem>>, %arg4: memref<8xf32, #tpu.memory_space<smem>>) -> (i32, i32) {
    %c0_i32 = arith.constant 0 : i32
    %c0_i32_0 = arith.constant 0 : i32
    %c0_i32_1 = arith.constant 0 : i32
    return %c0_i32, %c0_i32_0 : i32, i32
  }
  func.func @transform_3(%arg0: i32, %arg1: memref<8xi32, #tpu.memory_space<smem>>, %arg2: memref<8xi32, #tpu.memory_space<smem>>, %arg3: memref<8xi32, #tpu.memory_space<smem>>, %arg4: memref<8xf32, #tpu.memory_space<smem>>) -> (i32, i32) {
    %c0_i32 = arith.constant 0 : i32
    %c0_i32_0 = arith.constant 0 : i32
    return %arg0, %c0_i32 : i32, i32
  }
}

</mosaic_0001>

<llo_original>
// kernel: tpu_custom_call.1
$region0: #{tpu_custom_call.1}
  #allocation0 [shape = 'u32[]', space=smem, size = 0x4, offset = 0x4, fixed_abs, tag = 'smem constant byte address 0x4 - core index']
  #allocation1 [shape = 'u32[72,128]{1,0:T(1,128)}', space=vmem, size = 0x9000, scoped, tag = 'internal scratch']
  #allocation2 [shape = 'f32[8,128]{1,0:T(8,128)}', space=vmem, size = 0x1000, scoped, tag = 'scratch operand']
  #allocation3 [shape = 's32[1]{0}', space=sflag, size = 0x4, scoped, tag = 'scoped memory for tpu_custom_call.1']
  #allocation4 [shape = 'u8[512]{0}', space=smem, size = 0x200, scoped, tag = 'prefetched SMEM operand 0']
  #allocation5 [shape = 'u8[512]{0}', space=smem, size = 0x200, scoped, tag = 'prefetched SMEM operand 1']
  #allocation6 [shape = 'u8[512]{0}', space=smem, size = 0x200, scoped, tag = 'prefetched SMEM operand 2']
  #allocation7 [shape = 'u8[512]{0}', space=smem, size = 0x200, scoped, tag = 'prefetched SMEM operand 3']
  %s0 = inlined_call_operand.hbm [shape: s32[8], index: 0, kind: input, shape index: {}]
  %s1 = inlined_call_operand.hbm [shape: s32[8], index: 1, kind: input, shape index: {}]
  %s2 = inlined_call_operand.vmem [shape: s32[8], index: 2, kind: input, shape index: {}]
  %s3 = inlined_call_operand.vmem [shape: f32[8], index: 3, kind: input, shape index: {}]
  %s4 = inlined_call_operand.hbm [shape: f32[56,128], index: 4, kind: input, shape index: {}]
  %s5 = inlined_call_operand.hbm [shape: f32[128,128], index: 5, kind: input, shape index: {}]
  %s6 = inlined_call_operand.vmem [shape: f32[1,128], index: 6, kind: input, shape index: {}]
  %s7 = inlined_call_operand.hbm [shape: f32[8,128], index: 7, kind: output, shape index: {}]
  %s8 = sld [smem:[#allocation0]]
  $region37: #{tpu_custom_call.1} parent=0
    _
  %s10 = ssub.s32 1, %s8
  %s11 = scalar_select 0, %s10, %s8
  %s13 = sshll.u32 %s0, 4
  %s14 = int_to_ptr.hbm [resolvable:$true] %s13
  %16 = dma.hbm_to_smem %s14, 16, [#allocation4], [#allocation3]
  %s18 = sshll.u32 %s1, 4
  %s19 = int_to_ptr.hbm [resolvable:$true] %s18
  %21 = dma.hbm_to_smem %s19, 16, [#allocation5], [#allocation3]
  %s23 = sshll.u32 %s2, 4
  %s24 = int_to_ptr.vmem [resolvable:$true] %s23
  %26 = dma.vmem_to_smem %s24, 16, [#allocation6], [#allocation3]
  %s28 = sshll.u32 %s3, 4
  %s29 = int_to_ptr.vmem [resolvable:$true] %s28
  %31 = dma.vmem_to_smem %s29, 16, [#allocation7], [#allocation3]
  %33 = dma.done [#allocation3], 64
  %34 = sfence
  $region1: #{tpu_custom_call.1} parent=0
    #allocation8 [shape = 'u8[28672]{0}', space=vmem, size = 0x7000, scoped, tag = 'input window, operand 4, single buffered']
    #allocation9 [shape = 's32[1]{0}', space=sflag, size = 0x4, scoped, tag = 'scoped memory for tpu_custom_call.1']
    #allocation10 [shape = 's32[1]{0}', space=sflag, size = 0x4, scoped, tag = 'scoped memory for tpu_custom_call.1']
    #allocation11 [shape = 'u8[65536]{0}', space=vmem, size = 0x10000, scoped, tag = 'input window, operand 5, single buffered']
    #allocation12 [shape = 's32[1]{0}', space=sflag, size = 0x4, scoped, tag = 'scoped memory for tpu_custom_call.1']
    #allocation13 [shape = 'u8[4096]{0}', space=vmem, size = 0x1000, scoped, tag = 'output window, operand 0, single buffered']
    %35 = vsyncpa [#allocation9], 0
    %36 = vsyncpa [#allocation12], 0
    %37 = vsyncpa [#allocation10], 0
    // Predicated region
    $region2: #{tpu_custom_call.1} parent=1 // pred_check
      _
    $region3: #{tpu_custom_call.1} parent=1 // pred_check_branch
      %39 = sbr.rel (0) target = $region5
    $region4: #{tpu_custom_call.1} parent=1 // pred_region
      %41 = vsyncadd [#allocation9], 0
      %s42 = sshll.u32 %s4, 4
      %s43 = int_to_ptr.hbm [resolvable:$true] %s42
      %s44 = sshll.u32 [#allocation8], 4
      %s45 = int_to_ptr.vmem [resolvable:$true] %s44
      %50 = dma.hbm_to_vmem [thread:$0]  %s43, 896, %s45, [#allocation9], 128, 128, 8
    $region5: #{tpu_custom_call.1} parent=1 // pred_fallthru
      _
    // Predicated region
    $region6: #{tpu_custom_call.1} parent=1 // pred_check
      _
    $region7: #{tpu_custom_call.1} parent=1 // pred_check_branch
      %52 = sbr.rel (0) target = $region9
    $region8: #{tpu_custom_call.1} parent=1 // pred_region
      %54 = vsyncadd [#allocation12], 0
      %s55 = sshll.u32 %s5, 4
      %s56 = int_to_ptr.hbm [resolvable:$true] %s55
      %s57 = sshll.u32 [#allocation11], 4
      %s58 = int_to_ptr.vmem [resolvable:$true] %s57
      %63 = dma.hbm_to_vmem [thread:$0]  %s56, 2048, %s58, [#allocation12], 128, 128, 8
    $region9: #{tpu_custom_call.1} parent=1 // pred_fallthru
      _
    // Predicated region
    $region10: #{tpu_custom_call.1} parent=1 // pred_check
      _
    $region11: #{tpu_custom_call.1} parent=1 // pred_check_branch
      %65 = sbr.rel (0) target = $region13
    $region12: #{tpu_custom_call.1} parent=1 // pred_region
      _
    $region13: #{tpu_custom_call.1} parent=1 // pred_fallthru
      _
    // Predicated region
    $region14: #{tpu_custom_call.1} parent=1 // pred_check
      _
    $region15: #{tpu_custom_call.1} parent=1 // pred_check_branch
      %67 = sbr.rel (0) target = $region17
    $region16: #{tpu_custom_call.1} parent=1 // pred_region
      %69 = dma.done [#allocation9], 896
    $region17: #{tpu_custom_call.1} parent=1 // pred_fallthru
      _
    // Predicated region
    $region18: #{tpu_custom_call.1} parent=1 // pred_check
      _
    $region19: #{tpu_custom_call.1} parent=1 // pred_check_branch
      %71 = sbr.rel (0) target = $region21
    $region20: #{tpu_custom_call.1} parent=1 // pred_region
      %73 = dma.done [#allocation12], 2048
    $region21: #{tpu_custom_call.1} parent=1 // pred_fallthru
      _
    %v74 = vlaneseq
    %v75 = vshrl.u32 %v74, 7
    %vm76 = vcmp.eq.s32.totalorder %v75, 0
    %v77 = vsel %vm76, 1, 0
    %v78 = vcvt.s32.f32 %v77
    %vm79 = vcmp.eq.s32.totalorder %v75, 1
    %v80 = vsel %vm79, 1, 0
    %v81 = vcvt.s32.f32 %v80
    %vm82 = vcmp.eq.s32.totalorder %v75, 2
    %v83 = vsel %vm82, 1, 0
    %v84 = vcvt.s32.f32 %v83
    %vm85 = vcmp.eq.s32.totalorder %v75, 3
    %v86 = vsel %vm85, 1, 0
    %v87 = vcvt.s32.f32 %v86
    %vm88 = vcmp.eq.s32.totalorder %v75, 4
    %v89 = vsel %vm88, 1, 0
    %v90 = vcvt.s32.f32 %v89
    %vm91 = vcmp.eq.s32.totalorder %v75, 5
    %v92 = vsel %vm91, 1, 0
    %v93 = vcvt.s32.f32 %v92
    %vm94 = vcmp.eq.s32.totalorder %v75, 6
    %v95 = vsel %vm94, 1, 0
    %v96 = vcvt.s32.f32 %v95
    %vm97 = vcmp.eq.s32.totalorder %v75, 7
    %v98 = vsel %vm97, 1, 0
    %v99 = vcvt.s32.f32 %v98
    %s100 = smul.u32 0, 8
    %s101 = sld [smem:[#allocation5 + %s100]]
    %s102 = sadd.s32 %s100, 1
    %s103 = sld [smem:[#allocation5 + %s102]]
    %s104 = sadd.s32 %s100, 2
    %s105 = sld [smem:[#allocation5 + %s104]]
    %s106 = sadd.s32 %s100, 3
    %s107 = sld [smem:[#allocation5 + %s106]]
    %s108 = sadd.s32 %s100, 4
    %s109 = sld [smem:[#allocation5 + %s108]]
    %s110 = sadd.s32 %s100, 5
    %s111 = sld [smem:[#allocation5 + %s110]]
    %s112 = sadd.s32 %s100, 6
    %s113 = sld [smem:[#allocation5 + %s112]]
    %s114 = sadd.s32 %s100, 7
    %s115 = sld [smem:[#allocation5 + %s114]]
    %s116 = sld [smem:[#allocation6 + %s100]]
    %s117 = sld [smem:[#allocation6 + %s102]]
    %s118 = sld [smem:[#allocation6 + %s104]]
    %s119 = sld [smem:[#allocation6 + %s106]]
    %s120 = sld [smem:[#allocation6 + %s108]]
    %s121 = sld [smem:[#allocation6 + %s110]]
    %s122 = sld [smem:[#allocation6 + %s112]]
    %s123 = sld [smem:[#allocation6 + %s114]]
    %s124 = sld [smem:[#allocation7 + %s100]]
    %s125 = sld [smem:[#allocation7 + %s102]]
    %s126 = sld [smem:[#allocation7 + %s104]]
    %s127 = sld [smem:[#allocation7 + %s106]]
    %s128 = sld [smem:[#allocation7 + %s108]]
    %s129 = sld [smem:[#allocation7 + %s110]]
    %s130 = sld [smem:[#allocation7 + %s112]]
    %s131 = sld [smem:[#allocation7 + %s114]]
    %p132 = scmp.gt.s32.totalorder %s116, %s117
    %s133 = scalar_select %p132, %s116, %s117
    %p134 = scmp.gt.s32.totalorder %s133, %s118
    %s135 = scalar_select %p134, %s133, %s118
    %p136 = scmp.gt.s32.totalorder %s135, %s119
    %s137 = scalar_select %p136, %s135, %s119
    %p138 = scmp.gt.s32.totalorder %s137, %s120
    %s139 = scalar_select %p138, %s137, %s120
    %p140 = scmp.gt.s32.totalorder %s139, %s121
    %s141 = scalar_select %p140, %s139, %s121
    %p142 = scmp.gt.s32.totalorder %s141, %s122
    %s143 = scalar_select %p142, %s141, %s122
    %p144 = scmp.gt.s32.totalorder %s143, %s123
    %s145 = scalar_select %p144, %s143, %s123
    // While loop
    $region22: #{tpu_custom_call.1} parent=1 // loop_pre_header
      _
    $region23: #{tpu_custom_call.1} parent=1 // loop_header
      %s147 = sphi 0, %s149
      %p148 = scmp.ge.s32.totalorder %s147, %s145
      %v152 = vphi 0.0, %v256
    $region24: #{tpu_custom_call.1} parent=1 // loop_header_branch
      %151 = sbr.rel (%p148) target = $region28
    $region25: #{tpu_custom_call.1} parent=1 // loop_body
      %s153 = sadd.s32 %s101, %s147
      %p154 = scmp.lt.s32.totalorder %s153, 7
      %s155 = scalar_select %p154, %s153, 7
      %s156 = sld [smem:[#allocation4 + %s155]]
      %s157 = scalar_lea.vmem [#allocation8], %s156
      %v158 = vld [vmem:[%s157] sm:$0x1]
      %p159 = scmp.lt.s32.totalorder %s147, %s116
      %s160 = scalar_select %p159, %s124, 0.0
      %v161 = vstv %s160
      %v162 = vmul.f32 %v78, %v161
      %v163 = vperm.slane %v158, 0
      %v164 = vmul.f32 %v162, %v163
      %v165 = vadd.f32 %v152, %v164
      %s166 = sadd.s32 %s103, %s147
      %p167 = scmp.lt.s32.totalorder %s166, 7
      %s168 = scalar_select %p167, %s166, 7
      %s169 = sld [smem:[#allocation4 + %s168]]
      %s170 = scalar_lea.vmem [#allocation8], %s169
      %v171 = vld [vmem:[%s170] sm:$0x1]
      %p172 = scmp.lt.s32.totalorder %s147, %s117
      %s173 = scalar_select %p172, %s125, 0.0
      %v174 = vstv %s173
      %v175 = vmul.f32 %v81, %v174
      %v176 = vperm.slane %v171, 0
      %v177 = vmul.f32 %v175, %v176
      %v178 = vadd.f32 %v165, %v177
      %s179 = sadd.s32 %s105, %s147
      %p180 = scmp.lt.s32.totalorder %s179, 7
      %s181 = scalar_select %p180, %s179, 7
      %s182 = sld [smem:[#allocation4 + %s181]]
      %s183 = scalar_lea.vmem [#allocation8], %s182
      %v184 = vld [vmem:[%s183] sm:$0x1]
      %p185 = scmp.lt.s32.totalorder %s147, %s118
      %s186 = scalar_select %p185, %s126, 0.0
      %v187 = vstv %s186
      %v188 = vmul.f32 %v84, %v187
      %v189 = vperm.slane %v184, 0
      %v190 = vmul.f32 %v188, %v189
      %v191 = vadd.f32 %v178, %v190
      %s192 = sadd.s32 %s107, %s147
      %p193 = scmp.lt.s32.totalorder %s192, 7
      %s194 = scalar_select %p193, %s192, 7
      %s195 = sld [smem:[#allocation4 + %s194]]
      %s196 = scalar_lea.vmem [#allocation8], %s195
      %v197 = vld [vmem:[%s196] sm:$0x1]
      %p198 = scmp.lt.s32.totalorder %s147, %s119
      %s199 = scalar_select %p198, %s127, 0.0
      %v200 = vstv %s199
      %v201 = vmul.f32 %v87, %v200
      %v202 = vperm.slane %v197, 0
      %v203 = vmul.f32 %v201, %v202
      %v204 = vadd.f32 %v191, %v203
      %s205 = sadd.s32 %s109, %s147
      %p206 = scmp.lt.s32.totalorder %s205, 7
      %s207 = scalar_select %p206, %s205, 7
      %s208 = sld [smem:[#allocation4 + %s207]]
      %s209 = scalar_lea.vmem [#allocation8], %s208
      %v210 = vld [vmem:[%s209] sm:$0x1]
      %p211 = scmp.lt.s32.totalorder %s147, %s120
      %s212 = scalar_select %p211, %s128, 0.0
      %v213 = vstv %s212
      %v214 = vmul.f32 %v90, %v213
      %v215 = vperm.slane %v210, 0
      %v216 = vmul.f32 %v214, %v215
      %v217 = vadd.f32 %v204, %v216
      %s218 = sadd.s32 %s111, %s147
      %p219 = scmp.lt.s32.totalorder %s218, 7
      %s220 = scalar_select %p219, %s218, 7
      %s221 = sld [smem:[#allocation4 + %s220]]
      %s222 = scalar_lea.vmem [#allocation8], %s221
      %v223 = vld [vmem:[%s222] sm:$0x1]
      %p224 = scmp.lt.s32.totalorder %s147, %s121
      %s225 = scalar_select %p224, %s129, 0.0
      %v226 = vstv %s225
      %v227 = vmul.f32 %v93, %v226
      %v228 = vperm.slane %v223, 0
      %v229 = vmul.f32 %v227, %v228
      %v230 = vadd.f32 %v217, %v229
      %s231 = sadd.s32 %s113, %s147
      %p232 = scmp.lt.s32.totalorder %s231, 7
      %s233 = scalar_select %p232, %s231, 7
      %s234 = sld [smem:[#allocation4 + %s233]]
      %s235 = scalar_lea.vmem [#allocation8], %s234
      %v236 = vld [vmem:[%s235] sm:$0x1]
      %p237 = scmp.lt.s32.totalorder %s147, %s122
      %s238 = scalar_select %p237, %s130, 0.0
      %v239 = vstv %s238
      %v240 = vmul.f32 %v96, %v239
      %v241 = vperm.slane %v236, 0
      %v242 = vmul.f32 %v240, %v241
      %v243 = vadd.f32 %v230, %v242
      %s244 = sadd.s32 %s115, %s147
      %p245 = scmp.lt.s32.totalorder %s244, 7
      %s246 = scalar_select %p245, %s244, 7
      %s247 = sld [smem:[#allocation4 + %s246]]
      %s248 = scalar_lea.vmem [#allocation8], %s247
      %v249 = vld [vmem:[%s248] sm:$0x1]
      %p250 = scmp.lt.s32.totalorder %s147, %s123
      %s251 = scalar_select %p250, %s131, 0.0
      %v252 = vstv %s251
      %v253 = vmul.f32 %v99, %v252
      %v254 = vperm.slane %v249, 0
      %v255 = vmul.f32 %v253, %v254
      %v256 = vadd.f32 %v243, %v255
    $region26: #{tpu_custom_call.1} parent=1 // loop_footer
      %s149 = sadd.s32 %s147, 1
    $region27: #{tpu_custom_call.1} parent=1 // loop_footer_branch
      %146 = sbr.rel target = $region23
    $region28: #{tpu_custom_call.1} parent=1 // loop_exit
      _
    %257 = vst [vmem:[#allocation2] sm:$0xff] %v152
    %v258 = vld [vmem:[#allocation2] sm:$0xff]
    %v259 = vld [vmem:[#allocation11] sm:$0xff]
    %v260 = vld [vmem:[#allocation11 + $0x8] sm:$0xff]
    %v261 = vld [vmem:[#allocation11 + $0x10] sm:$0xff]
    %v262 = vld [vmem:[#allocation11 + $0x18] sm:$0xff]
    %v263 = vld [vmem:[#allocation11 + $0x20] sm:$0xff]
    %v264 = vld [vmem:[#allocation11 + $0x28] sm:$0xff]
    %v265 = vld [vmem:[#allocation11 + $0x30] sm:$0xff]
    %v266 = vld [vmem:[#allocation11 + $0x38] sm:$0xff]
    %v267 = vld [vmem:[#allocation11 + $0x40] sm:$0xff]
    %v268 = vld [vmem:[#allocation11 + $0x48] sm:$0xff]
    %v269 = vld [vmem:[#allocation11 + $0x50] sm:$0xff]
    %v270 = vld [vmem:[#allocation11 + $0x58] sm:$0xff]
    %v271 = vld [vmem:[#allocation11 + $0x60] sm:$0xff]
    %v272 = vld [vmem:[#allocation11 + $0x68] sm:$0xff]
    %v273 = vld [vmem:[#allocation11 + $0x70] sm:$0xff]
    %v274 = vld [vmem:[#allocation11 + $0x78] sm:$0xff]
    %v275 = vld [vmem:[%s6] sm:$0x1]
    %v277 = vperm.slane %v275, 0
    %279 = vmatpush.msra.mxu0 %v274
    %280 = vmatpush.msra.mxu0 %v273
    %281 = vmatpush.msra.mxu0 %v272
    %282 = vmatpush.msra.mxu0 %v271
    %283 = vmatpush.msra.mxu0 %v270
    %284 = vmatpush.msra.mxu0 %v269
    %285 = vmatpush.msra.mxu0 %v268
    %286 = vmatpush.msra.mxu0 %v267
    %287 = vmatpush.msra.mxu0 %v266
    %288 = vmatpush.msra.mxu0 %v265
    %289 = vmatpush.msra.mxu0 %v264
    %290 = vmatpush.msra.mxu0 %v263
    %291 = vmatpush.msra.mxu0 %v262
    %292 = vmatpush.msra.mxu0 %v261
    %293 = vmatpush.msra.mxu0 %v260
    %294 = vmatpush.msra.mxu0 %v259
    %295 = vmatmul.f32.gmra.mxu0 %v258
    %v296 = vpop.f32.mrf.mxu0
    %v297 = vadd.f32 %v277, %v296
    %298 = vdwg.mxu0
    %299 = vst [vmem:[#allocation13] sm:$0xff] %v297
    // Predicated region
    $region29: #{tpu_custom_call.1} parent=1 // pred_check
      _
    $region30: #{tpu_custom_call.1} parent=1 // pred_check_branch
      %301 = sbr.rel (0) target = $region32
    $region31: #{tpu_custom_call.1} parent=1 // pred_region
      %303 = vsyncadd [#allocation10], 0
      %s305 = sshll.u32 [#allocation13], 4
      %s306 = int_to_ptr.vmem [resolvable:$true] %s305
      %s307 = sshll.u32 %s7, 4
      %s308 = int_to_ptr.hbm [resolvable:$true] %s307
      %310 = dma.vmem_to_hbm [thread:$0]  %s306, 128, %s308, [#allocation10]
    $region32: #{tpu_custom_call.1} parent=1 // pred_fallthru
      _
    // Predicated region
    $region33: #{tpu_custom_call.1} parent=1 // pred_check
      _
    $region34: #{tpu_custom_call.1} parent=1 // pred_check_branch
      %312 = sbr.rel (0) target = $region36
    $region35: #{tpu_custom_call.1} parent=1 // pred_region
      %314 = dma.done [#allocation10], 128
    $region36: #{tpu_custom_call.1} parent=1 // pred_fallthru
      _
    %315 = vsyncpa [#allocation9], 1
    %316 = vsyncpa [#allocation12], 1
    %317 = vsyncpa [#allocation10], 1

</llo_original>
